<compile_context>
chip_gen: v5e
topology: v5e:2x2
jax: 0.10.0
libtpu: 0.0.40
codegen_flags: <defaults>
</compile_context>

<pallas_src>
import math
import functools

import jax
import jax.numpy as jnp
from jax import lax
from jax.experimental import pallas as pl
from jax.experimental.pallas import tpu as pltpu

REVIN_EPS = 1e-5
_NEG_INF = -1e30


def _round_up(x, m):
    return ((x + m - 1) // m) * m


# ---------------------------------------------------------------------------
# Kernel
# ---------------------------------------------------------------------------
def _samformer_kernel(x_ref, wqkv_ref, bqkv_ref, wf_ref, bf_ref,
                      gamma_ref, inv_gamma_ref, beta_ref, mask_ref, out_ref,
                      *, seq_len, hid_pad, matmul_dtype):
    TR, Lp = x_ref.shape
    Hp = hid_pad
    L = seq_len

    x = x_ref[...].astype(jnp.float32)                        # (TR, Lp)

    # ---- RevIN 'norm': stats over the real L time steps of each row -------
    col = lax.broadcasted_iota(jnp.int32, (1, Lp), 1)
    valid = (col < L).astype(jnp.float32)                      # (1, Lp)
    inv_L = 1.0 / L
    mean = jnp.sum(x, axis=-1, keepdims=True) * inv_L          # padded cols = 0
    xc = (x - mean) * valid                                    # zero padded cols
    var = jnp.sum(xc * xc, axis=-1, keepdims=True) * inv_L
    inv_std = lax.rsqrt(var + REVIN_EPS)                       # EUP
    stdev = (var + REVIN_EPS) * inv_std                        # sqrt(var+eps)
    x_norm = xc * inv_std * gamma_ref[...] + beta_ref[...]     # (TR, Lp)
    # (padded columns of x_norm are multiplied by zero weight rows below)

    # ---- fused, lane-aligned Q/K/V projection (one MXU matmul) ------------
    qkv = jnp.dot(x_norm.astype(matmul_dtype), wqkv_ref[...],
                  preferred_element_type=jnp.float32) + bqkv_ref[...]
    q = qkv[:, :Hp].astype(matmul_dtype)            # 1/sqrt(H) folded into W_q
    k = qkv[:, Hp:2 * Hp].astype(matmul_dtype)
    v = qkv[:, 2 * Hp:].astype(matmul_dtype)        # (TR, Lp)

    # ---- channel attention as ONE block-diagonal-masked matmul ------------
    scores = lax.dot_general(q, k, (((1,), (1,)), ((), ())),
                             preferred_element_type=jnp.float32)   # (TR, TR)
    scores = scores + mask_ref[...]                 # -1e30 off the batch blocks
    m = jnp.max(scores, axis=-1, keepdims=True)
    p = jnp.exp(scores - m)
    p = p * pl.reciprocal(jnp.sum(p, axis=-1, keepdims=True), approx=True)
    att = jnp.dot(p.astype(matmul_dtype), v,
                  preferred_element_type=jnp.float32)               # (TR, Lp)

    # ---- residual + forecaster (unpadded P output) -------------------------
    res = (x_norm + att).astype(matmul_dtype)
    fc = jnp.dot(res, wf_ref[...],
                 preferred_element_type=jnp.float32) + bf_ref[...]  # (TR, P)

    # ---- RevIN 'denorm' (reciprocal precomputed in the wrapper) -----------
    out = (fc - beta_ref[...]) * inv_gamma_ref[...] * stdev + mean
    out_ref[...] = out.astype(out_ref.dtype)


# ---------------------------------------------------------------------------
# One-time weight preparation (hoisted out of the per-forward path)
# ---------------------------------------------------------------------------
def prepare_params(params, *, hid_dim, matmul_dtype=jnp.bfloat16):
    wq_t, bq, wk_t, bk, wv_t, bv, wf_t, bf, gamma, beta = params
    L = wq_t.shape[0]
    H = hid_dim
    P = wf_t.shape[1]
    Lp = _round_up(L, 128)
    Hp = _round_up(H, 128)
    scale = 1.0 / math.sqrt(H)

    # Fused Q/K/V weight; each segment starts on a 128-lane boundary and the
    # attention scale is folded into the Q columns.  Padded rows/cols are 0.
    nqkv = 2 * Hp + Lp
    wqkv = jnp.zeros((Lp, nqkv), jnp.float32)
    wqkv = wqkv.at[:L, :H].set(wq_t * scale)
    wqkv = wqkv.at[:L, Hp:Hp + H].set(wk_t)
    wqkv = wqkv.at[:L, 2 * Hp:2 * Hp + L].set(wv_t)
    bqkv = jnp.zeros((1, nqkv), jnp.float32)
    bqkv = bqkv.at[:, :H].set(bq.reshape(1, H) * scale)
    bqkv = bqkv.at[:, Hp:Hp + H].set(bk.reshape(1, H))
    bqkv = bqkv.at[:, 2 * Hp:2 * Hp + L].set(bv.reshape(1, L))

    wf_p = jnp.zeros((Lp, P), jnp.float32).at[:L, :].set(wf_t)
    bf_p = bf.reshape(1, P).astype(jnp.float32)

    gamma = gamma.reshape(-1, 1).astype(jnp.float32)
    beta = beta.reshape(-1, 1).astype(jnp.float32)
    inv_gamma = 1.0 / (gamma + REVIN_EPS * REVIN_EPS)   # loop-invariant recip

    return dict(
        wqkv=wqkv.astype(matmul_dtype), bqkv=bqkv,
        wf=wf_p.astype(matmul_dtype), bf=bf_p,
        gamma=gamma, inv_gamma=inv_gamma, beta=beta,
        seq_len=L, hid_dim=H, hid_pad=Hp, seq_pad=Lp, horizon=P,
        matmul_dtype=matmul_dtype,
    )


# ---------------------------------------------------------------------------
# Per-generation sizing helpers
# ---------------------------------------------------------------------------
def _tpu_generation_info():
    """Return (num_tensorcores, vmem_capacity_bytes) with safe fallbacks."""
    cores, vmem = 1, 64 * 1024 * 1024
    try:
        info = pltpu.get_tpu_info()
    except Exception:
        return cores, vmem
    v = getattr(info, "vmem_capacity_bytes", None)
    if isinstance(v, int) and v > 0:
        vmem = v
    found = False
    for name in ("num_cores", "core_count", "num_tensorcores",
                 "tensorcore_count", "num_tensor_cores"):
        c = getattr(info, name, None)
        if isinstance(c, int) and c > 0:
            cores, found = c, True
            break
    if not found:
        # Heuristic: 64 MiB-VMEM parts (v7x) have 2 TensorCores per chip.
        cores = 2 if vmem <= 64 * 1024 * 1024 else 1
    return cores, vmem


def _vmem_block_estimate(TR, Lp, Hp, P):
    nqkv = 2 * Hp + Lp
    consts = 4 * (Lp * nqkv + nqkv + Lp * P + P + 3 * TR) + 4 * TR * TR
    per_row = 4 * (2 * Lp          # x block (double-buffered)
                   + 2 * P         # out block (double-buffered)
                   + nqkv          # fused qkv result
                   + 4 * Lp        # x / xc / x_norm / att / residual
                   + 2 * TR        # scores + probabilities
                   + 2 * P)        # forecaster + denorm
    return consts + TR * per_row


def _pick_batch_tile(B, C, Lp, Hp, P, vmem_budget, num_cores):
    """Batch tile TB (in batch elements).  TR = TB*C rows per grid step, TR a
    multiple of 8 sublanes, the (TR, TR) attention block capped at ~512, the
    VMEM estimate under budget, and >= 2 grid steps of real work only on
    2-TensorCore parts."""
    tb_unit = 8 // math.gcd(8, C)
    tb = max(tb_unit, (512 // max(C, 1)) // tb_unit * tb_unit)
    tb = min(tb, _round_up(B, tb_unit))             # no bigger than the batch
    if num_cores >= 2 and B >= 2 * tb_unit:
        half = max(tb_unit, ((B + 1) // 2) // tb_unit * tb_unit)
        tb = min(tb, half)
    while tb > tb_unit and _vmem_block_estimate(tb * C, Lp, Hp, P) > vmem_budget:
        tb -= tb_unit
    return tb


# ---------------------------------------------------------------------------
# Forward wrapper
# ---------------------------------------------------------------------------
def samformer_forward(x, prep, *, flatten_output=True):
    """x: (B, C, L) float32.  Returns (B, C*P) if flatten_output else (B, C, P)."""
    B, C, L = x.shape
    assert L == prep["seq_len"]
    Lp, Hp, P = prep["seq_pad"], prep["hid_pad"], prep["horizon"]

    num_cores, vmem_cap = _tpu_generation_info()
    vmem_limit = int(min(max(32 * 2 ** 20, vmem_cap * 3 // 4), 100 * 2 ** 20))
    vmem_budget = vmem_limit // 2

    TB = _pick_batch_tile(B, C, Lp, Hp, P, vmem_budget, num_cores)
    TR = TB * C
    B_pad = _round_up(B, TB)
    R, R_pad = B * C, B_pad * C
    grid = (B_pad // TB,)

    # Rows flattened & lane-padded HERE so the kernel never reshapes/relayouts.
    x_rows = jnp.pad(x.reshape(R, L).astype(jnp.float32),
                     ((0, R_pad - R), (0, Lp - L)))

    # Per-row RevIN params for one tile (channel pattern repeats every C rows).
    gamma_t = jnp.tile(prep["gamma"], (TB, 1))
    inv_gamma_t = jnp.tile(prep["inv_gamma"], (TB, 1))
    beta_t = jnp.tile(prep["beta"], (TB, 1))

    # Block-diagonal additive mask: rows attend only within their batch element.
    grp = jnp.arange(TR, dtype=jnp.int32) // C
    neg_mask = jnp.where(grp[:, None] == grp[None, :], 0.0,
                         _NEG_INF).astype(jnp.float32)

    consts = (prep["wqkv"], prep["bqkv"], prep["wf"], prep["bf"],
              gamma_t, inv_gamma_t, beta_t, neg_mask)

    kernel = functools.partial(_samformer_kernel, seq_len=L, hid_pad=Hp,
                               matmul_dtype=prep["matmul_dtype"])

    nqkv = 2 * Hp + Lp
    cost = pl.CostEstimate(
        flops=int(2 * R_pad * (Lp * nqkv + TR * Hp + TR * Lp + Lp * P)),
        transcendentals=int(R_pad * (TR + 3)),
        bytes_accessed=int(4 * R_pad * (Lp + P) + 2 * Lp * (nqkv + P)
                           + 4 * TR * (TR + 3)),
    )

    def call(single_buffer_consts):
        def const_spec(arr):
            nd = arr.ndim
            idx = (lambda i, _nd=nd: (0,) * _nd)
            if single_buffer_consts:
                return pl.BlockSpec(arr.shape, idx,
                                    pipeline_mode=pl.Buffered(1))
            return pl.BlockSpec(arr.shape, idx)

        return pl.pallas_call(
            kernel,
            out_shape=jax.ShapeDtypeStruct((R_pad, P), jnp.float32),
            grid=grid,
            in_specs=[pl.BlockSpec((TR, Lp), lambda i: (i, 0))]
                     + [const_spec(a) for a in consts],
            out_specs=pl.BlockSpec((TR, P), lambda i: (i, 0)),
            compiler_params=pltpu.CompilerParams(
                dimension_semantics=("parallel",),
                vmem_limit_bytes=vmem_limit),
            cost_estimate=cost,
        )(x_rows, *consts)

    try:
        out_rows = call(True)     # single-buffer the loop-invariant operands
    except Exception:
        out_rows = call(False)    # fallback for jax without pipeline_mode

    out = out_rows[:R].reshape(B, C, P)
    if flatten_output:
        return out.reshape(B, C * P)
    return out


# ---------------------------------------------------------------------------
# Pure-JAX f32 reference mirroring the PyTorch forward
# ---------------------------------------------------------------------------
def _reference_forward(x, params, *, hid_dim, flatten_output=True):
    wq_t, bq, wk_t, bk, wv_t, bv, wf_t, bf, gamma, beta = params
    mean = jnp.mean(x, axis=-1, keepdims=True)
    var = jnp.mean((x - mean) ** 2, axis=-1, keepdims=True)
    stdev = jnp.sqrt(var + REVIN_EPS)
    g = gamma.reshape(1, -1, 1)
    b = beta.reshape(1, -1, 1)
    x_norm = (x - mean) / stdev * g + b
    q = x_norm @ wq_t + bq
    k = x_norm @ wk_t + bk
    v = x_norm @ wv_t + bv
    scores = jnp.einsum("bch,bdh->bcd", q, k) / math.sqrt(hid_dim)
    p = jax.nn.softmax(scores, axis=-1)
    att = jnp.einsum("bcd,bdl->bcl", p, v)
    out = x_norm + att
    fc = out @ wf_t + bf
    den = (fc - b) / (g + REVIN_EPS * REVIN_EPS) * stdev + mean
    if flatten_output:
        return den.reshape(den.shape[0], -1)
    return den


def init_params(key, num_channels, seq_len, hid_dim, pred_horizon):
    ks = jax.random.split(key, 8)
    s = 1.0 / math.sqrt(seq_len)
    # PyTorch Linear weight is (out, in); store transposed (in, out).
    wq_t = jax.random.uniform(ks[0], (seq_len, hid_dim), jnp.float32, -s, s)
    bq = jax.random.uniform(ks[1], (1, hid_dim), jnp.float32, -s, s)
    wk_t = jax.random.uniform(ks[2], (seq_len, hid_dim), jnp.float32, -s, s)
    bk = jax.random.uniform(ks[3], (1, hid_dim), jnp.float32, -s, s)
    wv_t = jax.random.uniform(ks[4], (seq_len, seq_len), jnp.float32, -s, s)
    bv = jax.random.uniform(ks[5], (1, seq_len), jnp.float32, -s, s)
    wf_t = jax.random.uniform(ks[6], (seq_len, pred_horizon), jnp.float32, -s, s)
    bf = jax.random.uniform(ks[7], (1, pred_horizon), jnp.float32, -s, s)
    # RevIN affine params: ones / zeros, shape (C, 1).
    gamma = jnp.ones((num_channels, 1), jnp.float32)
    beta = jnp.zeros((num_channels, 1), jnp.float32)
    return (wq_t, bq, wk_t, bk, wv_t, bv, wf_t, bf, gamma, beta)


if __name__ == "__main__":
    B, C, L, H, P = 2, 4, 16, 32, 8  # batch, channels, seq_len, hid_dim, horizon

    key = jax.random.PRNGKey(0)
    kx, kp = jax.random.split(key)
    x = jax.random.normal(kx, (B, C, L), jnp.float32)
    params = init_params(kp, C, L, H, P)

    ref = _reference_forward(x, params, hid_dim=H, flatten_output=True)

    # f32-MXU path: tight check (only the approx softmax reciprocal differs).
    prep_f32 = prepare_params(params, hid_dim=H, matmul_dtype=jnp.float32)
    out_f32 = jax.block_until_ready(
        samformer_forward(x, prep_f32, flatten_output=True))
    assert out_f32.shape == (B, C * P), out_f32.shape
    assert jnp.allclose(out_f32, ref, atol=5e-3, rtol=5e-3), \
        float(jnp.max(jnp.abs(out_f32 - ref)))

    # bf16-MXU path (default / fast on v6e+v7x): bf16-level tolerance.
    prep_bf16 = prepare_params(params, hid_dim=H)
    out_bf16 = jax.block_until_ready(
        samformer_forward(x, prep_bf16, flatten_output=True))
    assert out_bf16.shape == (B, C * P), out_bf16.shape
    assert jnp.allclose(out_bf16, ref, atol=5e-2, rtol=5e-2), \
        float(jnp.max(jnp.abs(out_bf16 - ref)))

    print("KERNEL_OK")
</pallas_src>

<mosaic_0001>
module attributes {stable_mosaic.version = 11 : i64} {
  func.func @_samformer_kernel(%arg0: i32, %arg1: memref<8x128xf32, #tpu.memory_space<vmem>>, %arg2: memref<128x384xf32, #tpu.memory_space<vmem>>, %arg3: memref<1x384xf32, #tpu.memory_space<vmem>>, %arg4: memref<128x8xf32, #tpu.memory_space<vmem>>, %arg5: memref<1x8xf32, #tpu.memory_space<vmem>>, %arg6: memref<8x1xf32, #tpu.memory_space<vmem>>, %arg7: memref<8x1xf32, #tpu.memory_space<vmem>>, %arg8: memref<8x1xf32, #tpu.memory_space<vmem>>, %arg9: memref<8x8xf32, #tpu.memory_space<vmem>>, %arg10: memref<8x8xf32, #tpu.memory_space<vmem>>) attributes {dimension_semantics = [#tpu.dimension_semantics<parallel>], iteration_bounds = array<i64: 1>, scalar_prefetch = 0 : i64, scratch_operands = 0 : i64, tpu.core_type = #tpu.core_type<tc>, window_params = [{transform_indices = @transform_0, window_bounds = array<i64: 8, 128>}, {pipeline_mode = #tpu.pipeline_mode<synchronous>, transform_indices = @transform_1, window_bounds = array<i64: 128, 384>}, {pipeline_mode = #tpu.pipeline_mode<synchronous>, transform_indices = @transform_2, window_bounds = array<i64: 1, 384>}, {pipeline_mode = #tpu.pipeline_mode<synchronous>, transform_indices = @transform_3, window_bounds = array<i64: 128, 8>}, {pipeline_mode = #tpu.pipeline_mode<synchronous>, transform_indices = @transform_4, window_bounds = array<i64: 1, 8>}, {pipeline_mode = #tpu.pipeline_mode<synchronous>, transform_indices = @transform_5, window_bounds = array<i64: 8, 1>}, {pipeline_mode = #tpu.pipeline_mode<synchronous>, transform_indices = @transform_6, window_bounds = array<i64: 8, 1>}, {pipeline_mode = #tpu.pipeline_mode<synchronous>, transform_indices = @transform_7, window_bounds = array<i64: 8, 1>}, {pipeline_mode = #tpu.pipeline_mode<synchronous>, transform_indices = @transform_8, window_bounds = array<i64: 8, 8>}, {transform_indices = @transform_9, window_bounds = array<i64: 8, 8>}]} {
    %c0 = arith.constant 0 : index
    %c0_0 = arith.constant 0 : index
    %0 = vector.load %arg1[%c0, %c0_0] : memref<8x128xf32, #tpu.memory_space<vmem>>, vector<8x128xf32>
    %1 = tpu.iota {dimensions = array<i32: 1>} : vector<1x128xi32>
    %c16_i32 = arith.constant 16 : i32
    %2 = vector.broadcast %c16_i32 : i32 to vector<1x128xi32>
    %3 = arith.cmpi slt, %1, %2 : vector<1x128xi32>
    %4 = arith.extui %3 : vector<1x128xi1> to vector<1x128xi32>
    %5 = arith.sitofp %4 : vector<1x128xi32> to vector<1x128xf32>
    %cst = arith.constant dense<0.000000e+00> : vector<8xf32>
    %6 = vector.multi_reduction <add>, %0, %cst [1] : vector<8x128xf32> to vector<8xf32>
    %7 = vector.shape_cast %6 : vector<8xf32> to vector<8x1xf32>
    %cst_1 = arith.constant 6.250000e-02 : f32
    %8 = vector.broadcast %cst_1 : f32 to vector<8x1xf32>
    %9 = arith.mulf %7, %8 : vector<8x1xf32>
    %10 = vector.broadcast %9 : vector<8x1xf32> to vector<8x128xf32>
    %11 = arith.subf %0, %10 : vector<8x128xf32>
    %12 = vector.broadcast %5 : vector<1x128xf32> to vector<8x128xf32>
    %13 = arith.mulf %11, %12 : vector<8x128xf32>
    %14 = arith.mulf %13, %13 : vector<8x128xf32>
    %cst_2 = arith.constant dense<0.000000e+00> : vector<8xf32>
    %15 = vector.multi_reduction <add>, %14, %cst_2 [1] : vector<8x128xf32> to vector<8xf32>
    %16 = vector.shape_cast %15 : vector<8xf32> to vector<8x1xf32>
    %cst_3 = arith.constant 6.250000e-02 : f32
    %17 = vector.broadcast %cst_3 : f32 to vector<8x1xf32>
    %18 = arith.mulf %16, %17 : vector<8x1xf32>
    %cst_4 = arith.constant 9.99999974E-6 : f32
    %19 = vector.broadcast %cst_4 : f32 to vector<8x1xf32>
    %20 = arith.addf %18, %19 : vector<8x1xf32>
    %21 = math.rsqrt %20 : vector<8x1xf32>
    %cst_5 = arith.constant 9.99999974E-6 : f32
    %22 = vector.broadcast %cst_5 : f32 to vector<8x1xf32>
    %23 = arith.addf %18, %22 : vector<8x1xf32>
    %24 = arith.mulf %23, %21 : vector<8x1xf32>
    %25 = vector.broadcast %21 : vector<8x1xf32> to vector<8x128xf32>
    %26 = arith.mulf %13, %25 : vector<8x128xf32>
    %c0_6 = arith.constant 0 : index
    %c0_7 = arith.constant 0 : index
    %27 = vector.load %arg6[%c0_6, %c0_7] : memref<8x1xf32, #tpu.memory_space<vmem>>, vector<8x1xf32>
    %28 = vector.broadcast %27 : vector<8x1xf32> to vector<8x128xf32>
    %29 = arith.mulf %26, %28 : vector<8x128xf32>
    %c0_8 = arith.constant 0 : index
    %c0_9 = arith.constant 0 : index
    %30 = vector.load %arg8[%c0_8, %c0_9] : memref<8x1xf32, #tpu.memory_space<vmem>>, vector<8x1xf32>
    %31 = vector.broadcast %30 : vector<8x1xf32> to vector<8x128xf32>
    %32 = arith.addf %29, %31 : vector<8x128xf32>
    %c0_10 = arith.constant 0 : index
    %c0_11 = arith.constant 0 : index
    %33 = vector.load %arg2[%c0_10, %c0_11] : memref<128x384xf32, #tpu.memory_space<vmem>>, vector<128x384xf32>
    %cst_12 = arith.constant dense<0.000000e+00> : vector<8x384xf32>
    %34 = tpu.matmul %32, %33, %cst_12 {dimension_numbers = #tpu.dot_dimension_numbers<[1], [0], [0], [1], [0, 0, 1, 1], [], []>} : vector<8x128xf32>, vector<128x384xf32>, vector<8x384xf32> -> vector<8x384xf32>
    %c0_13 = arith.constant 0 : index
    %c0_14 = arith.constant 0 : index
    %35 = vector.load %arg3[%c0_13, %c0_14] : memref<1x384xf32, #tpu.memory_space<vmem>>, vector<1x384xf32>
    %36 = vector.broadcast %35 : vector<1x384xf32> to vector<8x384xf32>
    %37 = arith.addf %34, %36 : vector<8x384xf32>
    %38 = vector.extract_strided_slice %37 {offsets = [0, 0], sizes = [8, 128], strides = [1, 1]} : vector<8x384xf32> to vector<8x128xf32>
    %39 = vector.extract_strided_slice %37 {offsets = [0, 128], sizes = [8, 128], strides = [1, 1]} : vector<8x384xf32> to vector<8x128xf32>
    %40 = vector.extract_strided_slice %37 {offsets = [0, 256], sizes = [8, 128], strides = [1, 1]} : vector<8x384xf32> to vector<8x128xf32>
    %cst_15 = arith.constant dense<0.000000e+00> : vector<8x8xf32>
    %41 = tpu.matmul %38, %39, %cst_15 {dimension_numbers = #tpu.dot_dimension_numbers<[1], [1], [0], [0], [0, 0, 1, 0], [], []>} : vector<8x128xf32>, vector<8x128xf32>, vector<8x8xf32> -> vector<8x8xf32>
    %c0_16 = arith.constant 0 : index
    %c0_17 = arith.constant 0 : index
    %42 = vector.load %arg9[%c0_16, %c0_17] : memref<8x8xf32, #tpu.memory_space<vmem>>, vector<8x8xf32>
    %43 = arith.addf %41, %42 : vector<8x8xf32>
    %cst_18 = arith.constant dense<0xFF800000> : vector<8xf32>
    %44 = vector.multi_reduction <maximumf>, %43, %cst_18 [1] : vector<8x8xf32> to vector<8xf32>
    %45 = vector.shape_cast %44 : vector<8xf32> to vector<8x1xf32>
    %46 = vector.broadcast %45 : vector<8x1xf32> to vector<8x8xf32>
    %47 = arith.subf %43, %46 : vector<8x8xf32>
    %48 = math.exp %47 : vector<8x8xf32>
    %cst_19 = arith.constant dense<0.000000e+00> : vector<8xf32>
    %49 = vector.multi_reduction <add>, %48, %cst_19 [1] : vector<8x8xf32> to vector<8xf32>
    %50 = vector.shape_cast %49 : vector<8xf32> to vector<8x1xf32>
    %51 = tpu.reciprocal %50 {approx = true} : vector<8x1xf32> -> vector<8x1xf32>
    %52 = vector.broadcast %51 : vector<8x1xf32> to vector<8x8xf32>
    %53 = arith.mulf %48, %52 : vector<8x8xf32>
    %cst_20 = arith.constant dense<0.000000e+00> : vector<8x128xf32>
    %54 = tpu.matmul %53, %40, %cst_20 {dimension_numbers = #tpu.dot_dimension_numbers<[1], [0], [0], [1], [0, 0, 1, 1], [], []>} : vector<8x8xf32>, vector<8x128xf32>, vector<8x128xf32> -> vector<8x128xf32>
    %55 = arith.addf %32, %54 : vector<8x128xf32>
    %c0_21 = arith.constant 0 : index
    %c0_22 = arith.constant 0 : index
    %56 = vector.load %arg4[%c0_21, %c0_22] : memref<128x8xf32, #tpu.memory_space<vmem>>, vector<128x8xf32>
    %cst_23 = arith.constant dense<0.000000e+00> : vector<8x8xf32>
    %57 = tpu.matmul %55, %56, %cst_23 {dimension_numbers = #tpu.dot_dimension_numbers<[1], [0], [0], [1], [0, 0, 1, 1], [], []>} : vector<8x128xf32>, vector<128x8xf32>, vector<8x8xf32> -> vector<8x8xf32>
    %c0_24 = arith.constant 0 : index
    %c0_25 = arith.constant 0 : index
    %58 = vector.load %arg5[%c0_24, %c0_25] : memref<1x8xf32, #tpu.memory_space<vmem>>, vector<1x8xf32>
    %59 = vector.broadcast %58 : vector<1x8xf32> to vector<8x8xf32>
    %60 = arith.addf %57, %59 : vector<8x8xf32>
    %c0_26 = arith.constant 0 : index
    %c0_27 = arith.constant 0 : index
    %61 = vector.load %arg8[%c0_26, %c0_27] : memref<8x1xf32, #tpu.memory_space<vmem>>, vector<8x1xf32>
    %62 = vector.broadcast %61 : vector<8x1xf32> to vector<8x8xf32>
    %63 = arith.subf %60, %62 : vector<8x8xf32>
    %c0_28 = arith.constant 0 : index
    %c0_29 = arith.constant 0 : index
    %64 = vector.load %arg7[%c0_28, %c0_29] : memref<8x1xf32, #tpu.memory_space<vmem>>, vector<8x1xf32>
    %65 = vector.broadcast %64 : vector<8x1xf32> to vector<8x8xf32>
    %66 = arith.mulf %63, %65 : vector<8x8xf32>
    %67 = vector.broadcast %24 : vector<8x1xf32> to vector<8x8xf32>
    %68 = arith.mulf %66, %67 : vector<8x8xf32>
    %69 = vector.broadcast %9 : vector<8x1xf32> to vector<8x8xf32>
    %70 = arith.addf %68, %69 : vector<8x8xf32>
    %c0_30 = arith.constant 0 : index
    %c0_31 = arith.constant 0 : index
    %71 = vector.load %arg10[%c0_30, %c0_31] : memref<8x8xf32, #tpu.memory_space<vmem>>, vector<8x8xf32>
    tpu.vector_store %arg10[%c0_30, %c0_31], %70 {strides = array<i32>} : memref<8x8xf32, #tpu.memory_space<vmem>>, vector<8x8xf32>,
    return
  }
  func.func @transform_0(%arg0: i32) -> (i32, i32) {
    %c0_i32 = arith.constant 0 : i32
    %c0_i32_0 = arith.constant 0 : i32
    return %arg0, %c0_i32 : i32, i32
  }
  func.func @transform_1(%arg0: i32) -> (i32, i32) {
    %c0_i32 = arith.constant 0 : i32
    %c0_i32_0 = arith.constant 0 : i32
    %c0_i32_1 = arith.constant 0 : i32
    return %c0_i32, %c0_i32_0 : i32, i32
  }
  func.func @transform_2(%arg0: i32) -> (i32, i32) {
    %c0_i32 = arith.constant 0 : i32
    %c0_i32_0 = arith.constant 0 : i32
    %c0_i32_1 = arith.constant 0 : i32
    return %c0_i32, %c0_i32_0 : i32, i32
  }
  func.func @transform_3(%arg0: i32) -> (i32, i32) {
    %c0_i32 = arith.constant 0 : i32
    %c0_i32_0 = arith.constant 0 : i32
    %c0_i32_1 = arith.constant 0 : i32
    return %c0_i32, %c0_i32_0 : i32, i32
  }
  func.func @transform_4(%arg0: i32) -> (i32, i32) {
    %c0_i32 = arith.constant 0 : i32
    %c0_i32_0 = arith.constant 0 : i32
    %c0_i32_1 = arith.constant 0 : i32
    return %c0_i32, %c0_i32_0 : i32, i32
  }
  func.func @transform_5(%arg0: i32) -> (i32, i32) {
    %c0_i32 = arith.constant 0 : i32
    %c0_i32_0 = arith.constant 0 : i32
    %c0_i32_1 = arith.constant 0 : i32
    return %c0_i32, %c0_i32_0 : i32, i32
  }
  func.func @transform_6(%arg0: i32) -> (i32, i32) {
    %c0_i32 = arith.constant 0 : i32
    %c0_i32_0 = arith.constant 0 : i32
    %c0_i32_1 = arith.constant 0 : i32
    return %c0_i32, %c0_i32_0 : i32, i32
  }
  func.func @transform_7(%arg0: i32) -> (i32, i32) {
    %c0_i32 = arith.constant 0 : i32
    %c0_i32_0 = arith.constant 0 : i32
    %c0_i32_1 = arith.constant 0 : i32
    return %c0_i32, %c0_i32_0 : i32, i32
  }
  func.func @transform_8(%arg0: i32) -> (i32, i32) {
    %c0_i32 = arith.constant 0 : i32
    %c0_i32_0 = arith.constant 0 : i32
    %c0_i32_1 = arith.constant 0 : i32
    return %c0_i32, %c0_i32_0 : i32, i32
  }
  func.func @transform_9(%arg0: i32) -> (i32, i32) {
    %c0_i32 = arith.constant 0 : i32
    %c0_i32_0 = arith.constant 0 : i32
    return %arg0, %c0_i32 : i32, i32
  }
}

module attributes {stable_mosaic.version = 11 : i64} {
  func.func @_samformer_kernel(%arg0: i32, %arg1: memref<8x128xf32, #tpu.memory_space<vmem>>, %arg2: memref<128x384xf32, #tpu.memory_space<vmem>>, %arg3: memref<1x384xf32, #tpu.memory_space<vmem>>, %arg4: memref<128x8xf32, #tpu.memory_space<vmem>>, %arg5: memref<1x8xf32, #tpu.memory_space<vmem>>, %arg6: memref<8x1xf32, #tpu.memory_space<vmem>>, %arg7: memref<8x1xf32, #tpu.memory_space<vmem>>, %arg8: memref<8x1xf32, #tpu.memory_space<vmem>>, %arg9: memref<8x8xf32, #tpu.memory_space<vmem>>, %arg10: memref<8x8xf32, #tpu.memory_space<vmem>>) attributes {dimension_semantics = [#tpu.dimension_semantics<parallel>], iteration_bounds = array<i64: 1>, scalar_prefetch = 0 : i64, scratch_operands = 0 : i64, tpu.core_type = #tpu.core_type<tc>, window_params = [{transform_indices = @transform_0, window_bounds = array<i64: 8, 128>}, {pipeline_mode = #tpu.pipeline_mode<synchronous>, transform_indices = @transform_1, window_bounds = array<i64: 128, 384>}, {pipeline_mode = #tpu.pipeline_mode<synchronous>, transform_indices = @transform_2, window_bounds = array<i64: 1, 384>}, {pipeline_mode = #tpu.pipeline_mode<synchronous>, transform_indices = @transform_3, window_bounds = array<i64: 128, 8>}, {pipeline_mode = #tpu.pipeline_mode<synchronous>, transform_indices = @transform_4, window_bounds = array<i64: 1, 8>}, {pipeline_mode = #tpu.pipeline_mode<synchronous>, transform_indices = @transform_5, window_bounds = array<i64: 8, 1>}, {pipeline_mode = #tpu.pipeline_mode<synchronous>, transform_indices = @transform_6, window_bounds = array<i64: 8, 1>}, {pipeline_mode = #tpu.pipeline_mode<synchronous>, transform_indices = @transform_7, window_bounds = array<i64: 8, 1>}, {pipeline_mode = #tpu.pipeline_mode<synchronous>, transform_indices = @transform_8, window_bounds = array<i64: 8, 8>}, {transform_indices = @transform_9, window_bounds = array<i64: 8, 8>}]} {
    %c0 = arith.constant 0 : index
    %c0_0 = arith.constant 0 : index
    %0 = vector.load %arg1[%c0, %c0_0] : memref<8x128xf32, #tpu.memory_space<vmem>>, vector<8x128xf32>
    %1 = tpu.iota {dimensions = array<i32: 1>} : vector<1x128xi32>
    %c16_i32 = arith.constant 16 : i32
    %2 = vector.broadcast %c16_i32 : i32 to vector<1x128xi32>
    %3 = arith.cmpi slt, %1, %2 : vector<1x128xi32>
    %4 = arith.extui %3 : vector<1x128xi1> to vector<1x128xi32>
    %5 = arith.sitofp %4 : vector<1x128xi32> to vector<1x128xf32>
    %cst = arith.constant dense<0.000000e+00> : vector<8xf32>
    %6 = vector.multi_reduction <add>, %0, %cst [1] : vector<8x128xf32> to vector<8xf32>
    %7 = vector.shape_cast %6 : vector<8xf32> to vector<8x1xf32>
    %cst_1 = arith.constant 6.250000e-02 : f32
    %8 = vector.broadcast %cst_1 : f32 to vector<8x1xf32>
    %9 = arith.mulf %7, %8 : vector<8x1xf32>
    %10 = vector.broadcast %9 : vector<8x1xf32> to vector<8x128xf32>
    %11 = arith.subf %0, %10 : vector<8x128xf32>
    %12 = vector.broadcast %5 : vector<1x128xf32> to vector<8x128xf32>
    %13 = arith.mulf %11, %12 : vector<8x128xf32>
    %14 = arith.mulf %13, %13 : vector<8x128xf32>
    %cst_2 = arith.constant dense<0.000000e+00> : vector<8xf32>
    %15 = vector.multi_reduction <add>, %14, %cst_2 [1] : vector<8x128xf32> to vector<8xf32>
    %16 = vector.shape_cast %15 : vector<8xf32> to vector<8x1xf32>
    %cst_3 = arith.constant 6.250000e-02 : f32
    %17 = vector.broadcast %cst_3 : f32 to vector<8x1xf32>
    %18 = arith.mulf %16, %17 : vector<8x1xf32>
    %cst_4 = arith.constant 9.99999974E-6 : f32
    %19 = vector.broadcast %cst_4 : f32 to vector<8x1xf32>
    %20 = arith.addf %18, %19 : vector<8x1xf32>
    %21 = math.rsqrt %20 : vector<8x1xf32>
    %cst_5 = arith.constant 9.99999974E-6 : f32
    %22 = vector.broadcast %cst_5 : f32 to vector<8x1xf32>
    %23 = arith.addf %18, %22 : vector<8x1xf32>
    %24 = arith.mulf %23, %21 : vector<8x1xf32>
    %25 = vector.broadcast %21 : vector<8x1xf32> to vector<8x128xf32>
    %26 = arith.mulf %13, %25 : vector<8x128xf32>
    %c0_6 = arith.constant 0 : index
    %c0_7 = arith.constant 0 : index
    %27 = vector.load %arg6[%c0_6, %c0_7] : memref<8x1xf32, #tpu.memory_space<vmem>>, vector<8x1xf32>
    %28 = vector.broadcast %27 : vector<8x1xf32> to vector<8x128xf32>
    %29 = arith.mulf %26, %28 : vector<8x128xf32>
    %c0_8 = arith.constant 0 : index
    %c0_9 = arith.constant 0 : index
    %30 = vector.load %arg8[%c0_8, %c0_9] : memref<8x1xf32, #tpu.memory_space<vmem>>, vector<8x1xf32>
    %31 = vector.broadcast %30 : vector<8x1xf32> to vector<8x128xf32>
    %32 = arith.addf %29, %31 : vector<8x128xf32>
    %c0_10 = arith.constant 0 : index
    %c0_11 = arith.constant 0 : index
    %33 = vector.load %arg2[%c0_10, %c0_11] : memref<128x384xf32, #tpu.memory_space<vmem>>, vector<128x384xf32>
    %cst_12 = arith.constant dense<0.000000e+00> : vector<8x384xf32>
    %34 = tpu.matmul %32, %33, %cst_12 {dimension_numbers = #tpu.dot_dimension_numbers<[1], [0], [0], [1], [0, 0, 1, 1], [], []>} : vector<8x128xf32>, vector<128x384xf32>, vector<8x384xf32> -> vector<8x384xf32>
    %c0_13 = arith.constant 0 : index
    %c0_14 = arith.constant 0 : index
    %35 = vector.load %arg3[%c0_13, %c0_14] : memref<1x384xf32, #tpu.memory_space<vmem>>, vector<1x384xf32>
    %36 = vector.broadcast %35 : vector<1x384xf32> to vector<8x384xf32>
    %37 = arith.addf %34, %36 : vector<8x384xf32>
    %38 = vector.extract_strided_slice %37 {offsets = [0, 0], sizes = [8, 128], strides = [1, 1]} : vector<8x384xf32> to vector<8x128xf32>
    %39 = vector.extract_strided_slice %37 {offsets = [0, 128], sizes = [8, 128], strides = [1, 1]} : vector<8x384xf32> to vector<8x128xf32>
    %40 = vector.extract_strided_slice %37 {offsets = [0, 256], sizes = [8, 128], strides = [1, 1]} : vector<8x384xf32> to vector<8x128xf32>
    %cst_15 = arith.constant dense<0.000000e+00> : vector<8x8xf32>
    %41 = tpu.matmul %38, %39, %cst_15 {dimension_numbers = #tpu.dot_dimension_numbers<[1], [1], [0], [0], [0, 0, 1, 0], [], []>} : vector<8x128xf32>, vector<8x128xf32>, vector<8x8xf32> -> vector<8x8xf32>
    %c0_16 = arith.constant 0 : index
    %c0_17 = arith.constant 0 : index
    %42 = vector.load %arg9[%c0_16, %c0_17] : memref<8x8xf32, #tpu.memory_space<vmem>>, vector<8x8xf32>
    %43 = arith.addf %41, %42 : vector<8x8xf32>
    %cst_18 = arith.constant dense<0xFF800000> : vector<8xf32>
    %44 = vector.multi_reduction <maximumf>, %43, %cst_18 [1] : vector<8x8xf32> to vector<8xf32>
    %45 = vector.shape_cast %44 : vector<8xf32> to vector<8x1xf32>
    %46 = vector.broadcast %45 : vector<8x1xf32> to vector<8x8xf32>
    %47 = arith.subf %43, %46 : vector<8x8xf32>
    %48 = math.exp %47 : vector<8x8xf32>
    %cst_19 = arith.constant dense<0.000000e+00> : vector<8xf32>
    %49 = vector.multi_reduction <add>, %48, %cst_19 [1] : vector<8x8xf32> to vector<8xf32>
    %50 = vector.shape_cast %49 : vector<8xf32> to vector<8x1xf32>
    %51 = tpu.reciprocal %50 {approx = true} : vector<8x1xf32> -> vector<8x1xf32>
    %52 = vector.broadcast %51 : vector<8x1xf32> to vector<8x8xf32>
    %53 = arith.mulf %48, %52 : vector<8x8xf32>
    %cst_20 = arith.constant dense<0.000000e+00> : vector<8x128xf32>
    %54 = tpu.matmul %53, %40, %cst_20 {dimension_numbers = #tpu.dot_dimension_numbers<[1], [0], [0], [1], [0, 0, 1, 1], [], []>} : vector<8x8xf32>, vector<8x128xf32>, vector<8x128xf32> -> vector<8x128xf32>
    %55 = arith.addf %32, %54 : vector<8x128xf32>
    %c0_21 = arith.constant 0 : index
    %c0_22 = arith.constant 0 : index
    %56 = vector.load %arg4[%c0_21, %c0_22] : memref<128x8xf32, #tpu.memory_space<vmem>>, vector<128x8xf32>
    %cst_23 = arith.constant dense<0.000000e+00> : vector<8x8xf32>
    %57 = tpu.matmul %55, %56, %cst_23 {dimension_numbers = #tpu.dot_dimension_numbers<[1], [0], [0], [1], [0, 0, 1, 1], [], []>} : vector<8x128xf32>, vector<128x8xf32>, vector<8x8xf32> -> vector<8x8xf32>
    %c0_24 = arith.constant 0 : index
    %c0_25 = arith.constant 0 : index
    %58 = vector.load %arg5[%c0_24, %c0_25] : memref<1x8xf32, #tpu.memory_space<vmem>>, vector<1x8xf32>
    %59 = vector.broadcast %58 : vector<1x8xf32> to vector<8x8xf32>
    %60 = arith.addf %57, %59 : vector<8x8xf32>
    %c0_26 = arith.constant 0 : index
    %c0_27 = arith.constant 0 : index
    %61 = vector.load %arg8[%c0_26, %c0_27] : memref<8x1xf32, #tpu.memory_space<vmem>>, vector<8x1xf32>
    %62 = vector.broadcast %61 : vector<8x1xf32> to vector<8x8xf32>
    %63 = arith.subf %60, %62 : vector<8x8xf32>
    %c0_28 = arith.constant 0 : index
    %c0_29 = arith.constant 0 : index
    %64 = vector.load %arg7[%c0_28, %c0_29] : memref<8x1xf32, #tpu.memory_space<vmem>>, vector<8x1xf32>
    %65 = vector.broadcast %64 : vector<8x1xf32> to vector<8x8xf32>
    %66 = arith.mulf %63, %65 : vector<8x8xf32>
    %67 = vector.broadcast %24 : vector<8x1xf32> to vector<8x8xf32>
    %68 = arith.mulf %66, %67 : vector<8x8xf32>
    %69 = vector.broadcast %9 : vector<8x1xf32> to vector<8x8xf32>
    %70 = arith.addf %68, %69 : vector<8x8xf32>
    %c0_30 = arith.constant 0 : index
    %c0_31 = arith.constant 0 : index
    %71 = vector.load %arg10[%c0_30, %c0_31] : memref<8x8xf32, #tpu.memory_space<vmem>>, vector<8x8xf32>
    tpu.vector_store %arg10[%c0_30, %c0_31], %70 {strides = array<i32>} : memref<8x8xf32, #tpu.memory_space<vmem>>, vector<8x8xf32>,
    return
  }
  func.func @transform_0(%arg0: i32) -> (i32, i32) {
    %c0_i32 = arith.constant 0 : i32
    %c0_i32_0 = arith.constant 0 : i32
    return %arg0, %c0_i32 : i32, i32
  }
  func.func @transform_1(%arg0: i32) -> (i32, i32) {
    %c0_i32 = arith.constant 0 : i32
    %c0_i32_0 = arith.constant 0 : i32
    %c0_i32_1 = arith.constant 0 : i32
    return %c0_i32, %c0_i32_0 : i32, i32
  }
  func.func @transform_2(%arg0: i32) -> (i32, i32) {
    %c0_i32 = arith.constant 0 : i32
    %c0_i32_0 = arith.constant 0 : i32
    %c0_i32_1 = arith.constant 0 : i32
    return %c0_i32, %c0_i32_0 : i32, i32
  }
  func.func @transform_3(%arg0: i32) -> (i32, i32) {
    %c0_i32 = arith.constant 0 : i32
    %c0_i32_0 = arith.constant 0 : i32
    %c0_i32_1 = arith.constant 0 : i32
    return %c0_i32, %c0_i32_0 : i32, i32
  }
  func.func @transform_4(%arg0: i32) -> (i32, i32) {
    %c0_i32 = arith.constant 0 : i32
    %c0_i32_0 = arith.constant 0 : i32
    %c0_i32_1 = arith.constant 0 : i32
    return %c0_i32, %c0_i32_0 : i32, i32
  }
  func.func @transform_5(%arg0: i32) -> (i32, i32) {
    %c0_i32 = arith.constant 0 : i32
    %c0_i32_0 = arith.constant 0 : i32
    %c0_i32_1 = arith.constant 0 : i32
    return %c0_i32, %c0_i32_0 : i32, i32
  }
  func.func @transform_6(%arg0: i32) -> (i32, i32) {
    %c0_i32 = arith.constant 0 : i32
    %c0_i32_0 = arith.constant 0 : i32
    %c0_i32_1 = arith.constant 0 : i32
    return %c0_i32, %c0_i32_0 : i32, i32
  }
  func.func @transform_7(%arg0: i32) -> (i32, i32) {
    %c0_i32 = arith.constant 0 : i32
    %c0_i32_0 = arith.constant 0 : i32
    %c0_i32_1 = arith.constant 0 : i32
    return %c0_i32, %c0_i32_0 : i32, i32
  }
  func.func @transform_8(%arg0: i32) -> (i32, i32) {
    %c0_i32 = arith.constant 0 : i32
    %c0_i32_0 = arith.constant 0 : i32
    %c0_i32_1 = arith.constant 0 : i32
    return %c0_i32, %c0_i32_0 : i32, i32
  }
  func.func @transform_9(%arg0: i32) -> (i32, i32) {
    %c0_i32 = arith.constant 0 : i32
    %c0_i32_0 = arith.constant 0 : i32
    return %arg0, %c0_i32 : i32, i32
  }
}

</mosaic_0001>

<llo_original>
// kernel: tpu_custom_call.1
$region0: #{tpu_custom_call.1}
  #allocation0 [shape = 'u32[]', space=smem, size = 0x4, offset = 0x4, fixed_abs, tag = 'smem constant byte address 0x4 - core index']
  #allocation1 [shape = 'u32[72,128]{1,0:T(1,128)}', space=vmem, size = 0x9000, scoped, tag = 'internal scratch']
  %s0 = inlined_call_operand.vmem [shape: f32[8,128], index: 0, kind: input, shape index: {}]
  %s1 = inlined_call_operand.hbm [shape: f32[128,384], index: 1, kind: input, shape index: {}]
  %s2 = inlined_call_operand.vmem [shape: f32[1,384], index: 2, kind: input, shape index: {}]
  %s3 = inlined_call_operand.vmem [shape: f32[128,8], index: 3, kind: input, shape index: {}]
  %s4 = inlined_call_operand.vmem [shape: f32[1,8], index: 4, kind: input, shape index: {}]
  %s5 = inlined_call_operand.vmem [shape: f32[8,1], index: 5, kind: input, shape index: {}]
  %s6 = inlined_call_operand.vmem [shape: f32[8,1], index: 6, kind: input, shape index: {}]
  %s7 = inlined_call_operand.vmem [shape: f32[8,1], index: 7, kind: input, shape index: {}]
  %s8 = inlined_call_operand.vmem [shape: f32[8,8], index: 8, kind: input, shape index: {}]
  %s9 = inlined_call_operand.hbm [shape: f32[8,8], index: 9, kind: output, shape index: {}]
  %s10 = sld [smem:[#allocation0]]
  $region50: #{tpu_custom_call.1} parent=0
    _
  %s12 = ssub.s32 1, %s10
  %s13 = scalar_select 0, %s12, %s10
  $region1: #{tpu_custom_call.1} parent=0
    #allocation2 [shape = 'u8[196608]{0}', space=vmem, size = 0x30000, scoped, tag = 'input window, operand 1, single buffered']
    #allocation3 [shape = 's32[1]{0}', space=sflag, size = 0x4, scoped, tag = 'scoped memory for tpu_custom_call.1']
    #allocation4 [shape = 's32[1]{0}', space=sflag, size = 0x4, scoped, tag = 'scoped memory for tpu_custom_call.1']
    #allocation5 [shape = 'u8[4096]{0}', space=vmem, size = 0x1000, scoped, tag = 'output window, operand 0, single buffered']
    %14 = vsyncpa [#allocation3], 0
    %15 = vsyncpa [#allocation4], 0
    // Predicated region
    $region2: #{tpu_custom_call.1} parent=1 // pred_check
      _
    $region3: #{tpu_custom_call.1} parent=1 // pred_check_branch
      %17 = sbr.rel (0) target = $region5
    $region4: #{tpu_custom_call.1} parent=1 // pred_region
      _
    $region5: #{tpu_custom_call.1} parent=1 // pred_fallthru
      _
    // Predicated region
    $region6: #{tpu_custom_call.1} parent=1 // pred_check
      _
    $region7: #{tpu_custom_call.1} parent=1 // pred_check_branch
      %19 = sbr.rel (0) target = $region9
    $region8: #{tpu_custom_call.1} parent=1 // pred_region
      %21 = vsyncadd [#allocation3], 0
      %s22 = sshll.u32 %s1, 4
      %s23 = int_to_ptr.hbm [resolvable:$true] %s22
      %s24 = sshll.u32 [#allocation2], 4
      %s25 = int_to_ptr.vmem [resolvable:$true] %s24
      %30 = dma.hbm_to_vmem [thread:$0]  %s23, 6144, %s25, [#allocation3], 384, 384, 24
    $region9: #{tpu_custom_call.1} parent=1 // pred_fallthru
      _
    // Predicated region
    $region10: #{tpu_custom_call.1} parent=1 // pred_check
      _
    $region11: #{tpu_custom_call.1} parent=1 // pred_check_branch
      %32 = sbr.rel (0) target = $region13
    $region12: #{tpu_custom_call.1} parent=1 // pred_region
      _
    $region13: #{tpu_custom_call.1} parent=1 // pred_fallthru
      _
    // Predicated region
    $region14: #{tpu_custom_call.1} parent=1 // pred_check
      _
    $region15: #{tpu_custom_call.1} parent=1 // pred_check_branch
      %34 = sbr.rel (0) target = $region17
    $region16: #{tpu_custom_call.1} parent=1 // pred_region
      _
    $region17: #{tpu_custom_call.1} parent=1 // pred_fallthru
      _
    // Predicated region
    $region18: #{tpu_custom_call.1} parent=1 // pred_check
      _
    $region19: #{tpu_custom_call.1} parent=1 // pred_check_branch
      %36 = sbr.rel (0) target = $region21
    $region20: #{tpu_custom_call.1} parent=1 // pred_region
      _
    $region21: #{tpu_custom_call.1} parent=1 // pred_fallthru
      _
    // Predicated region
    $region22: #{tpu_custom_call.1} parent=1 // pred_check
      _
    $region23: #{tpu_custom_call.1} parent=1 // pred_check_branch
      %38 = sbr.rel (0) target = $region25
    $region24: #{tpu_custom_call.1} parent=1 // pred_region
      _
    $region25: #{tpu_custom_call.1} parent=1 // pred_fallthru
      _
    // Predicated region
    $region26: #{tpu_custom_call.1} parent=1 // pred_check
      _
    $region27: #{tpu_custom_call.1} parent=1 // pred_check_branch
      %40 = sbr.rel (0) target = $region29
    $region28: #{tpu_custom_call.1} parent=1 // pred_region
      _
    $region29: #{tpu_custom_call.1} parent=1 // pred_fallthru
      _
    // Predicated region
    $region30: #{tpu_custom_call.1} parent=1 // pred_check
      _
    $region31: #{tpu_custom_call.1} parent=1 // pred_check_branch
      %42 = sbr.rel (0) target = $region33
    $region32: #{tpu_custom_call.1} parent=1 // pred_region
      _
    $region33: #{tpu_custom_call.1} parent=1 // pred_fallthru
      _
    // Predicated region
    $region34: #{tpu_custom_call.1} parent=1 // pred_check
      _
    $region35: #{tpu_custom_call.1} parent=1 // pred_check_branch
      %44 = sbr.rel (0) target = $region37
    $region36: #{tpu_custom_call.1} parent=1 // pred_region
      _
    $region37: #{tpu_custom_call.1} parent=1 // pred_fallthru
      _
    // Predicated region
    $region38: #{tpu_custom_call.1} parent=1 // pred_check
      _
    $region39: #{tpu_custom_call.1} parent=1 // pred_check_branch
      %46 = sbr.rel (0) target = $region41
    $region40: #{tpu_custom_call.1} parent=1 // pred_region
      %48 = dma.done [#allocation3], 6144
    $region41: #{tpu_custom_call.1} parent=1 // pred_fallthru
      _
    %v49 = vld [vmem:[%s0] sm:$0xff]
    %v50 = vlaneseq
    %v51 = vand.u32 %v50, 127
    %vm52 = vcmp.lt.s32.totalorder %v51, 16
    %v53 = vsel %vm52, 1, 0
    %v54 = vcvt.s32.f32 %v53
    %55 = vadd.xlane.f32.xlu0 %v49
    %v56 = vpop.xlane.xlu0 %55
    %v57 = vmul.f32 %v56, 0.0625
    %v58 = vsub.f32 %v49, %v57
    %v59 = vmul.f32 %v58, %v54
    %v60 = vmul.f32 %v59, %v59
    %61 = vadd.xlane.f32.xlu0 %v60
    %v62 = vpop.xlane.xlu0 %61
    %v63 = vmul.f32 %v62, 0.0625
    %v64 = vadd.f32 %v63, 1e-05
    %v65 = vrsqrt.pop %v64
    %v66 = vmul.f32 %v65, %v64
    %v67 = vmul.f32 %v66, %v65
    %v68 = vmul.f32 0.5, %v67
    %v69 = vsub.f32 1.5, %v68
    %v70 = vmul.f32 %v65, %v69
    %vm71 = vweird.f32 %v64
    %vm72 = vweird.f32 %v65
    %vm73 = vmor %vm71, %vm72
    %v74 = vsel %vm73, %v65, %v70
    %v75 = vmul.f32 %v64, %v74
    %v76 = vmul.f32 %v59, %v74
    %v77 = vld [vmem:[%s5] sm:$0xff]
    %79 = vset.pattern.permute.xlu0 0
    %80 = vperm.xlu0 %79, %v77
    %v81 = vpop.permute.xlu0 %80
    %v83 = vmul.f32 %v76, %v81
    %v84 = vld [vmem:[%s7] sm:$0xff]
    %86 = vset.pattern.permute.xlu0 0
    %87 = vperm.xlu0 %86, %v84
    %v88 = vpop.permute.xlu0 %87
    %v90 = vadd.f32 %v83, %v88
    %v91 = vld [vmem:[#allocation2] sm:$0xff]
    %v92 = vld [vmem:[#allocation2 + $0x8] sm:$0xff]
    %v93 = vld [vmem:[#allocation2 + $0x10] sm:$0xff]
    %v94 = vld [vmem:[#allocation2 + $0x18] sm:$0xff]
    %v95 = vld [vmem:[#allocation2 + $0x20] sm:$0xff]
    %v96 = vld [vmem:[#allocation2 + $0x28] sm:$0xff]
    %v97 = vld [vmem:[#allocation2 + $0x30] sm:$0xff]
    %v98 = vld [vmem:[#allocation2 + $0x38] sm:$0xff]
    %v99 = vld [vmem:[#allocation2 + $0x40] sm:$0xff]
    %v100 = vld [vmem:[#allocation2 + $0x48] sm:$0xff]
    %v101 = vld [vmem:[#allocation2 + $0x50] sm:$0xff]
    %v102 = vld [vmem:[#allocation2 + $0x58] sm:$0xff]
    %v103 = vld [vmem:[#allocation2 + $0x60] sm:$0xff]
    %v104 = vld [vmem:[#allocation2 + $0x68] sm:$0xff]
    %v105 = vld [vmem:[#allocation2 + $0x70] sm:$0xff]
    %v106 = vld [vmem:[#allocation2 + $0x78] sm:$0xff]
    %v107 = vld [vmem:[#allocation2 + $0x80] sm:$0xff]
    %v108 = vld [vmem:[#allocation2 + $0x88] sm:$0xff]
    %v109 = vld [vmem:[#allocation2 + $0x90] sm:$0xff]
    %v110 = vld [vmem:[#allocation2 + $0x98] sm:$0xff]
    %v111 = vld [vmem:[#allocation2 + $0xa0] sm:$0xff]
    %v112 = vld [vmem:[#allocation2 + $0xa8] sm:$0xff]
    %v113 = vld [vmem:[#allocation2 + $0xb0] sm:$0xff]
    %v114 = vld [vmem:[#allocation2 + $0xb8] sm:$0xff]
    %v115 = vld [vmem:[#allocation2 + $0xc0] sm:$0xff]
    %v116 = vld [vmem:[#allocation2 + $0xc8] sm:$0xff]
    %v117 = vld [vmem:[#allocation2 + $0xd0] sm:$0xff]
    %v118 = vld [vmem:[#allocation2 + $0xd8] sm:$0xff]
    %v119 = vld [vmem:[#allocation2 + $0xe0] sm:$0xff]
    %v120 = vld [vmem:[#allocation2 + $0xe8] sm:$0xff]
    %v121 = vld [vmem:[#allocation2 + $0xf0] sm:$0xff]
    %v122 = vld [vmem:[#allocation2 + $0xf8] sm:$0xff]
    %v123 = vld [vmem:[#allocation2 + $0x100] sm:$0xff]
    %v124 = vld [vmem:[#allocation2 + $0x108] sm:$0xff]
    %v125 = vld [vmem:[#allocation2 + $0x110] sm:$0xff]
    %v126 = vld [vmem:[#allocation2 + $0x118] sm:$0xff]
    %v127 = vld [vmem:[#allocation2 + $0x120] sm:$0xff]
    %v128 = vld [vmem:[#allocation2 + $0x128] sm:$0xff]
    %v129 = vld [vmem:[#allocation2 + $0x130] sm:$0xff]
    %v130 = vld [vmem:[#allocation2 + $0x138] sm:$0xff]
    %v131 = vld [vmem:[#allocation2 + $0x140] sm:$0xff]
    %v132 = vld [vmem:[#allocation2 + $0x148] sm:$0xff]
    %v133 = vld [vmem:[#allocation2 + $0x150] sm:$0xff]
    %v134 = vld [vmem:[#allocation2 + $0x158] sm:$0xff]
    %v135 = vld [vmem:[#allocation2 + $0x160] sm:$0xff]
    %v136 = vld [vmem:[#allocation2 + $0x168] sm:$0xff]
    %v137 = vld [vmem:[#allocation2 + $0x170] sm:$0xff]
    %v138 = vld [vmem:[#allocation2 + $0x178] sm:$0xff]
    %v139 = vld [vmem:[%s2] sm:$0x7]
    %v141 = vperm.slane %v139, 0
    %v142 = vperm.slane %v139, 1
    %v143 = vperm.slane %v139, 2
    %147 = vmatpush.msra.mxu0 %v136
    %148 = vmatpush.msra.mxu0 %v133
    %149 = vmatpush.msra.mxu0 %v130
    %150 = vmatpush.msra.mxu0 %v127
    %151 = vmatpush.msra.mxu0 %v124
    %152 = vmatpush.msra.mxu0 %v121
    %153 = vmatpush.msra.mxu0 %v118
    %154 = vmatpush.msra.mxu0 %v115
    %155 = vmatpush.msra.mxu0 %v112
    %156 = vmatpush.msra.mxu0 %v109
    %157 = vmatpush.msra.mxu0 %v106
    %158 = vmatpush.msra.mxu0 %v103
    %159 = vmatpush.msra.mxu0 %v100
    %160 = vmatpush.msra.mxu0 %v97
    %161 = vmatpush.msra.mxu0 %v94
    %162 = vmatpush.msra.mxu0 %v91
    %163 = vmatmul.f32.gmra.mxu0 %v90
    %v164 = vpop.f32.mrf.mxu0
    %v165 = vadd.f32 %v141, %v164
    %166 = vdwg.mxu0
    %167 = vmatpush.msra.mxu0 %v137
    %168 = vmatpush.msra.mxu0 %v134
    %169 = vmatpush.msra.mxu0 %v131
    %170 = vmatpush.msra.mxu0 %v128
    %171 = vmatpush.msra.mxu0 %v125
    %172 = vmatpush.msra.mxu0 %v122
    %173 = vmatpush.msra.mxu0 %v119
    %174 = vmatpush.msra.mxu0 %v116
    %175 = vmatpush.msra.mxu0 %v113
    %176 = vmatpush.msra.mxu0 %v110
    %177 = vmatpush.msra.mxu0 %v107
    %178 = vmatpush.msra.mxu0 %v104
    %179 = vmatpush.msra.mxu0 %v101
    %180 = vmatpush.msra.mxu0 %v98
    %181 = vmatpush.msra.mxu0 %v95
    %182 = vmatpush.msra.mxu0 %v92
    %183 = vmatmul.f32.gmra.mxu0 %v90
    %v184 = vpop.f32.mrf.mxu0
    %v185 = vadd.f32 %v142, %v184
    %186 = vdwg.mxu0
    %187 = vmatpush.msra.mxu0 %v138
    %188 = vmatpush.msra.mxu0 %v135
    %189 = vmatpush.msra.mxu0 %v132
    %190 = vmatpush.msra.mxu0 %v129
    %191 = vmatpush.msra.mxu0 %v126
    %192 = vmatpush.msra.mxu0 %v123
    %193 = vmatpush.msra.mxu0 %v120
    %194 = vmatpush.msra.mxu0 %v117
    %195 = vmatpush.msra.mxu0 %v114
    %196 = vmatpush.msra.mxu0 %v111
    %197 = vmatpush.msra.mxu0 %v108
    %198 = vmatpush.msra.mxu0 %v105
    %199 = vmatpush.msra.mxu0 %v102
    %200 = vmatpush.msra.mxu0 %v99
    %201 = vmatpush.msra.mxu0 %v96
    %202 = vmatpush.msra.mxu0 %v93
    %203 = vmatmul.f32.gmra.mxu0 %v90
    %v204 = vpop.f32.mrf.mxu0
    %v205 = vadd.f32 %v143, %v204
    %206 = vdwg.mxu0
    %v207 = vld [vmem:[%s8] sm:$0xff]
    %208 = vmatpush.xpose.msra.mxu0 0.0
    %209 = vmatpush.xpose.msra.mxu0 0.0
    %210 = vmatpush.xpose.msra.mxu0 0.0
    %211 = vmatpush.xpose.msra.mxu0 0.0
    %212 = vmatpush.xpose.msra.mxu0 0.0
    %213 = vmatpush.xpose.msra.mxu0 0.0
    %214 = vmatpush.xpose.msra.mxu0 0.0
    %215 = vmatpush.xpose.msra.mxu0 0.0
    %216 = vmatpush.xpose.msra.mxu0 0.0
    %217 = vmatpush.xpose.msra.mxu0 0.0
    %218 = vmatpush.xpose.msra.mxu0 0.0
    %219 = vmatpush.xpose.msra.mxu0 0.0
    %220 = vmatpush.xpose.msra.mxu0 0.0
    %221 = vmatpush.xpose.msra.mxu0 0.0
    %222 = vmatpush.xpose.msra.mxu0 0.0
    %223 = vmatpush.xpose.msra.mxu0 %v185
    %224 = vmatmul.f32.gmra.mxu0 %v165
    %v225 = vpop.f32.mrf.mxu0
    %v226 = vadd.f32 %v207, %v225
    %227 = vdwg.mxu0
    %vm228 = vcmask 64512
    %v229 = vsel %vm228, %v226, -inf
    %230 = vmax.xlane.f32.xlu0 %v229
    %v231 = vpop.xlane.xlu0 %230
    %v232 = vsub.f32 %v226, %v231
    %v233 = vmul.f32 %v232, 1.442695
    %v234 = vpow.pop %v233
    %v235 = vsel %vm228, %v234, 0.0
    %236 = vadd.xlane.f32.xlu0 %v235
    %v237 = vpop.xlane.xlu0 %236
    %v238 = vrcp.pop %v237
    %v239 = vmul.f32 %v234, %v238
    %v241 = vsel %vm228, %v239, 0
    %243 = vmatpush.msra.mxu0 0.0
    %244 = vmatpush.msra.mxu0 0.0
    %245 = vmatpush.msra.mxu0 0.0
    %246 = vmatpush.msra.mxu0 0.0
    %247 = vmatpush.msra.mxu0 0.0
    %248 = vmatpush.msra.mxu0 0.0
    %249 = vmatpush.msra.mxu0 0.0
    %250 = vmatpush.msra.mxu0 0.0
    %251 = vmatpush.msra.mxu0 0.0
    %252 = vmatpush.msra.mxu0 0.0
    %253 = vmatpush.msra.mxu0 0.0
    %254 = vmatpush.msra.mxu0 0.0
    %255 = vmatpush.msra.mxu0 0.0
    %256 = vmatpush.msra.mxu0 0.0
    %257 = vmatpush.msra.mxu0 0.0
    %258 = vmatpush.msra.mxu0 %v205
    %259 = vmatmul.f32.gmra.mxu0 %v241
    %v260 = vpop.f32.mrf.mxu0
    %v261 = vadd.f32 0.0, %v260
    %262 = vdwg.mxu0
    %v263 = vadd.f32 %v90, %v261
    %v264 = vld [vmem:[%s3] sm:$0xff]
    %v265 = vld [vmem:[%s3 + $0x8] sm:$0xff]
    %v266 = vld [vmem:[%s3 + $0x10] sm:$0xff]
    %v267 = vld [vmem:[%s3 + $0x18] sm:$0xff]
    %v268 = vld [vmem:[%s3 + $0x20] sm:$0xff]
    %v269 = vld [vmem:[%s3 + $0x28] sm:$0xff]
    %v270 = vld [vmem:[%s3 + $0x30] sm:$0xff]
    %v271 = vld [vmem:[%s3 + $0x38] sm:$0xff]
    %v272 = vld [vmem:[%s3 + $0x40] sm:$0xff]
    %v273 = vld [vmem:[%s3 + $0x48] sm:$0xff]
    %v274 = vld [vmem:[%s3 + $0x50] sm:$0xff]
    %v275 = vld [vmem:[%s3 + $0x58] sm:$0xff]
    %v276 = vld [vmem:[%s3 + $0x60] sm:$0xff]
    %v277 = vld [vmem:[%s3 + $0x68] sm:$0xff]
    %v278 = vld [vmem:[%s3 + $0x70] sm:$0xff]
    %v279 = vld [vmem:[%s3 + $0x78] sm:$0xff]
    %v280 = vld [vmem:[%s4] sm:$0x1]
    %v282 = vperm.slane %v280, 0
    %284 = vmatpush.msra.mxu0 %v279
    %285 = vmatpush.msra.mxu0 %v278
    %286 = vmatpush.msra.mxu0 %v277
    %287 = vmatpush.msra.mxu0 %v276
    %288 = vmatpush.msra.mxu0 %v275
    %289 = vmatpush.msra.mxu0 %v274
    %290 = vmatpush.msra.mxu0 %v273
    %291 = vmatpush.msra.mxu0 %v272
    %292 = vmatpush.msra.mxu0 %v271
    %293 = vmatpush.msra.mxu0 %v270
    %294 = vmatpush.msra.mxu0 %v269
    %295 = vmatpush.msra.mxu0 %v268
    %296 = vmatpush.msra.mxu0 %v267
    %297 = vmatpush.msra.mxu0 %v266
    %298 = vmatpush.msra.mxu0 %v265
    %299 = vmatpush.msra.mxu0 %v264
    %300 = vmatmul.f32.gmra.mxu0 %v263
    %v301 = vpop.f32.mrf.mxu0
    %v302 = vadd.f32 %v282, %v301
    %303 = vdwg.mxu0
    %v304 = vsub.f32 %v302, %v88
    %v305 = vld [vmem:[%s6] sm:$0xff]
    %307 = vset.pattern.permute.xlu0 0
    %308 = vperm.xlu0 %307, %v305
    %v309 = vpop.permute.xlu0 %308
    %v311 = vmul.f32 %v304, %v309
    %v312 = vmul.f32 %v311, %v75
    %v313 = vadd.f32 %v312, %v57
    %314 = vst.msk [vmem:[#allocation5] sm:$0xff] %vm228, %v313
    // Predicated region
    $region42: #{tpu_custom_call.1} parent=1 // pred_check
      _
    $region43: #{tpu_custom_call.1} parent=1 // pred_check_branch
      %316 = sbr.rel (0) target = $region45
    $region44: #{tpu_custom_call.1} parent=1 // pred_region
      %318 = vsyncadd [#allocation4], 0
      %s320 = sshll.u32 [#allocation5], 4
      %s321 = int_to_ptr.vmem [resolvable:$true] %s320
      %s322 = sshll.u32 %s9, 4
      %s323 = int_to_ptr.hbm [resolvable:$true] %s322
      %325 = dma.vmem_to_hbm [thread:$0]  %s321, 128, %s323, [#allocation4]
    $region45: #{tpu_custom_call.1} parent=1 // pred_fallthru
      _
    // Predicated region
    $region46: #{tpu_custom_call.1} parent=1 // pred_check
      _
    $region47: #{tpu_custom_call.1} parent=1 // pred_check_branch
      %327 = sbr.rel (0) target = $region49
    $region48: #{tpu_custom_call.1} parent=1 // pred_region
      %329 = dma.done [#allocation4], 128
    $region49: #{tpu_custom_call.1} parent=1 // pred_fallthru
      _
    %330 = vsyncpa [#allocation3], 1
    %331 = vsyncpa [#allocation4], 1

// kernel: tpu_custom_call.1
$region0: #{tpu_custom_call.1}
  #allocation0 [shape = 'u32[]', space=smem, size = 0x4, offset = 0x4, fixed_abs, tag = 'smem constant byte address 0x4 - core index']
  #allocation1 [shape = 'u32[72,128]{1,0:T(1,128)}', space=vmem, size = 0x9000, scoped, tag = 'internal scratch']
  %s0 = inlined_call_operand.vmem [shape: f32[8,128], index: 0, kind: input, shape index: {}]
  %s1 = inlined_call_operand.hbm [shape: f32[128,384], index: 1, kind: input, shape index: {}]
  %s2 = inlined_call_operand.vmem [shape: f32[1,384], index: 2, kind: input, shape index: {}]
  %s3 = inlined_call_operand.vmem [shape: f32[128,8], index: 3, kind: input, shape index: {}]
  %s4 = inlined_call_operand.vmem [shape: f32[1,8], index: 4, kind: input, shape index: {}]
  %s5 = inlined_call_operand.vmem [shape: f32[8,1], index: 5, kind: input, shape index: {}]
  %s6 = inlined_call_operand.vmem [shape: f32[8,1], index: 6, kind: input, shape index: {}]
  %s7 = inlined_call_operand.vmem [shape: f32[8,1], index: 7, kind: input, shape index: {}]
  %s8 = inlined_call_operand.vmem [shape: f32[8,8], index: 8, kind: input, shape index: {}]
  %s9 = inlined_call_operand.hbm [shape: f32[8,8], index: 9, kind: output, shape index: {}]
  %s10 = sld [smem:[#allocation0]]
  $region50: #{tpu_custom_call.1} parent=0
    _
  %s12 = ssub.s32 1, %s10
  %s13 = scalar_select 0, %s12, %s10
  $region1: #{tpu_custom_call.1} parent=0
    #allocation2 [shape = 'u8[196608]{0}', space=vmem, size = 0x30000, scoped, tag = 'input window, operand 1, single buffered']
    #allocation3 [shape = 's32[1]{0}', space=sflag, size = 0x4, scoped, tag = 'scoped memory for tpu_custom_call.1']
    #allocation4 [shape = 's32[1]{0}', space=sflag, size = 0x4, scoped, tag = 'scoped memory for tpu_custom_call.1']
    #allocation5 [shape = 'u8[4096]{0}', space=vmem, size = 0x1000, scoped, tag = 'output window, operand 0, single buffered']
    %14 = vsyncpa [#allocation3], 0
    %15 = vsyncpa [#allocation4], 0
    // Predicated region
    $region2: #{tpu_custom_call.1} parent=1 // pred_check
      _
    $region3: #{tpu_custom_call.1} parent=1 // pred_check_branch
      %17 = sbr.rel (0) target = $region5
    $region4: #{tpu_custom_call.1} parent=1 // pred_region
      _
    $region5: #{tpu_custom_call.1} parent=1 // pred_fallthru
      _
    // Predicated region
    $region6: #{tpu_custom_call.1} parent=1 // pred_check
      _
    $region7: #{tpu_custom_call.1} parent=1 // pred_check_branch
      %19 = sbr.rel (0) target = $region9
    $region8: #{tpu_custom_call.1} parent=1 // pred_region
      %21 = vsyncadd [#allocation3], 0
      %s22 = sshll.u32 %s1, 4
      %s23 = int_to_ptr.hbm [resolvable:$true] %s22
      %s24 = sshll.u32 [#allocation2], 4
      %s25 = int_to_ptr.vmem [resolvable:$true] %s24
      %30 = dma.hbm_to_vmem [thread:$0]  %s23, 6144, %s25, [#allocation3], 384, 384, 24
    $region9: #{tpu_custom_call.1} parent=1 // pred_fallthru
      _
    // Predicated region
    $region10: #{tpu_custom_call.1} parent=1 // pred_check
      _
    $region11: #{tpu_custom_call.1} parent=1 // pred_check_branch
      %32 = sbr.rel (0) target = $region13
    $region12: #{tpu_custom_call.1} parent=1 // pred_region
      _
    $region13: #{tpu_custom_call.1} parent=1 // pred_fallthru
      _
    // Predicated region
    $region14: #{tpu_custom_call.1} parent=1 // pred_check
      _
    $region15: #{tpu_custom_call.1} parent=1 // pred_check_branch
      %34 = sbr.rel (0) target = $region17
    $region16: #{tpu_custom_call.1} parent=1 // pred_region
      _
    $region17: #{tpu_custom_call.1} parent=1 // pred_fallthru
      _
    // Predicated region
    $region18: #{tpu_custom_call.1} parent=1 // pred_check
      _
    $region19: #{tpu_custom_call.1} parent=1 // pred_check_branch
      %36 = sbr.rel (0) target = $region21
    $region20: #{tpu_custom_call.1} parent=1 // pred_region
      _
    $region21: #{tpu_custom_call.1} parent=1 // pred_fallthru
      _
    // Predicated region
    $region22: #{tpu_custom_call.1} parent=1 // pred_check
      _
    $region23: #{tpu_custom_call.1} parent=1 // pred_check_branch
      %38 = sbr.rel (0) target = $region25
    $region24: #{tpu_custom_call.1} parent=1 // pred_region
      _
    $region25: #{tpu_custom_call.1} parent=1 // pred_fallthru
      _
    // Predicated region
    $region26: #{tpu_custom_call.1} parent=1 // pred_check
      _
    $region27: #{tpu_custom_call.1} parent=1 // pred_check_branch
      %40 = sbr.rel (0) target = $region29
    $region28: #{tpu_custom_call.1} parent=1 // pred_region
      _
    $region29: #{tpu_custom_call.1} parent=1 // pred_fallthru
      _
    // Predicated region
    $region30: #{tpu_custom_call.1} parent=1 // pred_check
      _
    $region31: #{tpu_custom_call.1} parent=1 // pred_check_branch
      %42 = sbr.rel (0) target = $region33
    $region32: #{tpu_custom_call.1} parent=1 // pred_region
      _
    $region33: #{tpu_custom_call.1} parent=1 // pred_fallthru
      _
    // Predicated region
    $region34: #{tpu_custom_call.1} parent=1 // pred_check
      _
    $region35: #{tpu_custom_call.1} parent=1 // pred_check_branch
      %44 = sbr.rel (0) target = $region37
    $region36: #{tpu_custom_call.1} parent=1 // pred_region
      _
    $region37: #{tpu_custom_call.1} parent=1 // pred_fallthru
      _
    // Predicated region
    $region38: #{tpu_custom_call.1} parent=1 // pred_check
      _
    $region39: #{tpu_custom_call.1} parent=1 // pred_check_branch
      %46 = sbr.rel (0) target = $region41
    $region40: #{tpu_custom_call.1} parent=1 // pred_region
      %48 = dma.done [#allocation3], 6144
    $region41: #{tpu_custom_call.1} parent=1 // pred_fallthru
      _
    %v49 = vld [vmem:[%s0] sm:$0xff]
    %v50 = vlaneseq
    %v51 = vand.u32 %v50, 127
    %vm52 = vcmp.lt.s32.totalorder %v51, 16
    %v53 = vsel %vm52, 1, 0
    %v54 = vcvt.s32.f32 %v53
    %55 = vadd.xlane.f32.xlu0 %v49
    %v56 = vpop.xlane.xlu0 %55
    %v57 = vmul.f32 %v56, 0.0625
    %v58 = vsub.f32 %v49, %v57
    %v59 = vmul.f32 %v58, %v54
    %v60 = vmul.f32 %v59, %v59
    %61 = vadd.xlane.f32.xlu0 %v60
    %v62 = vpop.xlane.xlu0 %61
    %v63 = vmul.f32 %v62, 0.0625
    %v64 = vadd.f32 %v63, 1e-05
    %v65 = vrsqrt.pop %v64
    %v66 = vmul.f32 %v65, %v64
    %v67 = vmul.f32 %v66, %v65
    %v68 = vmul.f32 0.5, %v67
    %v69 = vsub.f32 1.5, %v68
    %v70 = vmul.f32 %v65, %v69
    %vm71 = vweird.f32 %v64
    %vm72 = vweird.f32 %v65
    %vm73 = vmor %vm71, %vm72
    %v74 = vsel %vm73, %v65, %v70
    %v75 = vmul.f32 %v64, %v74
    %v76 = vmul.f32 %v59, %v74
    %v77 = vld [vmem:[%s5] sm:$0xff]
    %79 = vset.pattern.permute.xlu0 0
    %80 = vperm.xlu0 %79, %v77
    %v81 = vpop.permute.xlu0 %80
    %v83 = vmul.f32 %v76, %v81
    %v84 = vld [vmem:[%s7] sm:$0xff]
    %86 = vset.pattern.permute.xlu0 0
    %87 = vperm.xlu0 %86, %v84
    %v88 = vpop.permute.xlu0 %87
    %v90 = vadd.f32 %v83, %v88
    %v91 = vld [vmem:[#allocation2] sm:$0xff]
    %v92 = vld [vmem:[#allocation2 + $0x8] sm:$0xff]
    %v93 = vld [vmem:[#allocation2 + $0x10] sm:$0xff]
    %v94 = vld [vmem:[#allocation2 + $0x18] sm:$0xff]
    %v95 = vld [vmem:[#allocation2 + $0x20] sm:$0xff]
    %v96 = vld [vmem:[#allocation2 + $0x28] sm:$0xff]
    %v97 = vld [vmem:[#allocation2 + $0x30] sm:$0xff]
    %v98 = vld [vmem:[#allocation2 + $0x38] sm:$0xff]
    %v99 = vld [vmem:[#allocation2 + $0x40] sm:$0xff]
    %v100 = vld [vmem:[#allocation2 + $0x48] sm:$0xff]
    %v101 = vld [vmem:[#allocation2 + $0x50] sm:$0xff]
    %v102 = vld [vmem:[#allocation2 + $0x58] sm:$0xff]
    %v103 = vld [vmem:[#allocation2 + $0x60] sm:$0xff]
    %v104 = vld [vmem:[#allocation2 + $0x68] sm:$0xff]
    %v105 = vld [vmem:[#allocation2 + $0x70] sm:$0xff]
    %v106 = vld [vmem:[#allocation2 + $0x78] sm:$0xff]
    %v107 = vld [vmem:[#allocation2 + $0x80] sm:$0xff]
    %v108 = vld [vmem:[#allocation2 + $0x88] sm:$0xff]
    %v109 = vld [vmem:[#allocation2 + $0x90] sm:$0xff]
    %v110 = vld [vmem:[#allocation2 + $0x98] sm:$0xff]
    %v111 = vld [vmem:[#allocation2 + $0xa0] sm:$0xff]
    %v112 = vld [vmem:[#allocation2 + $0xa8] sm:$0xff]
    %v113 = vld [vmem:[#allocation2 + $0xb0] sm:$0xff]
    %v114 = vld [vmem:[#allocation2 + $0xb8] sm:$0xff]
    %v115 = vld [vmem:[#allocation2 + $0xc0] sm:$0xff]
    %v116 = vld [vmem:[#allocation2 + $0xc8] sm:$0xff]
    %v117 = vld [vmem:[#allocation2 + $0xd0] sm:$0xff]
    %v118 = vld [vmem:[#allocation2 + $0xd8] sm:$0xff]
    %v119 = vld [vmem:[#allocation2 + $0xe0] sm:$0xff]
    %v120 = vld [vmem:[#allocation2 + $0xe8] sm:$0xff]
    %v121 = vld [vmem:[#allocation2 + $0xf0] sm:$0xff]
    %v122 = vld [vmem:[#allocation2 + $0xf8] sm:$0xff]
    %v123 = vld [vmem:[#allocation2 + $0x100] sm:$0xff]
    %v124 = vld [vmem:[#allocation2 + $0x108] sm:$0xff]
    %v125 = vld [vmem:[#allocation2 + $0x110] sm:$0xff]
    %v126 = vld [vmem:[#allocation2 + $0x118] sm:$0xff]
    %v127 = vld [vmem:[#allocation2 + $0x120] sm:$0xff]
    %v128 = vld [vmem:[#allocation2 + $0x128] sm:$0xff]
    %v129 = vld [vmem:[#allocation2 + $0x130] sm:$0xff]
    %v130 = vld [vmem:[#allocation2 + $0x138] sm:$0xff]
    %v131 = vld [vmem:[#allocation2 + $0x140] sm:$0xff]
    %v132 = vld [vmem:[#allocation2 + $0x148] sm:$0xff]
    %v133 = vld [vmem:[#allocation2 + $0x150] sm:$0xff]
    %v134 = vld [vmem:[#allocation2 + $0x158] sm:$0xff]
    %v135 = vld [vmem:[#allocation2 + $0x160] sm:$0xff]
    %v136 = vld [vmem:[#allocation2 + $0x168] sm:$0xff]
    %v137 = vld [vmem:[#allocation2 + $0x170] sm:$0xff]
    %v138 = vld [vmem:[#allocation2 + $0x178] sm:$0xff]
    %v139 = vld [vmem:[%s2] sm:$0x7]
    %v141 = vperm.slane %v139, 0
    %v142 = vperm.slane %v139, 1
    %v143 = vperm.slane %v139, 2
    %147 = vmatpush.msra.mxu0 %v136
    %148 = vmatpush.msra.mxu0 %v133
    %149 = vmatpush.msra.mxu0 %v130
    %150 = vmatpush.msra.mxu0 %v127
    %151 = vmatpush.msra.mxu0 %v124
    %152 = vmatpush.msra.mxu0 %v121
    %153 = vmatpush.msra.mxu0 %v118
    %154 = vmatpush.msra.mxu0 %v115
    %155 = vmatpush.msra.mxu0 %v112
    %156 = vmatpush.msra.mxu0 %v109
    %157 = vmatpush.msra.mxu0 %v106
    %158 = vmatpush.msra.mxu0 %v103
    %159 = vmatpush.msra.mxu0 %v100
    %160 = vmatpush.msra.mxu0 %v97
    %161 = vmatpush.msra.mxu0 %v94
    %162 = vmatpush.msra.mxu0 %v91
    %163 = vmatmul.f32.gmra.mxu0 %v90
    %v164 = vpop.f32.mrf.mxu0
    %v165 = vadd.f32 %v141, %v164
    %166 = vdwg.mxu0
    %167 = vmatpush.msra.mxu0 %v137
    %168 = vmatpush.msra.mxu0 %v134
    %169 = vmatpush.msra.mxu0 %v131
    %170 = vmatpush.msra.mxu0 %v128
    %171 = vmatpush.msra.mxu0 %v125
    %172 = vmatpush.msra.mxu0 %v122
    %173 = vmatpush.msra.mxu0 %v119
    %174 = vmatpush.msra.mxu0 %v116
    %175 = vmatpush.msra.mxu0 %v113
    %176 = vmatpush.msra.mxu0 %v110
    %177 = vmatpush.msra.mxu0 %v107
    %178 = vmatpush.msra.mxu0 %v104
    %179 = vmatpush.msra.mxu0 %v101
    %180 = vmatpush.msra.mxu0 %v98
    %181 = vmatpush.msra.mxu0 %v95
    %182 = vmatpush.msra.mxu0 %v92
    %183 = vmatmul.f32.gmra.mxu0 %v90
    %v184 = vpop.f32.mrf.mxu0
    %v185 = vadd.f32 %v142, %v184
    %186 = vdwg.mxu0
    %187 = vmatpush.msra.mxu0 %v138
    %188 = vmatpush.msra.mxu0 %v135
    %189 = vmatpush.msra.mxu0 %v132
    %190 = vmatpush.msra.mxu0 %v129
    %191 = vmatpush.msra.mxu0 %v126
    %192 = vmatpush.msra.mxu0 %v123
    %193 = vmatpush.msra.mxu0 %v120
    %194 = vmatpush.msra.mxu0 %v117
    %195 = vmatpush.msra.mxu0 %v114
    %196 = vmatpush.msra.mxu0 %v111
    %197 = vmatpush.msra.mxu0 %v108
    %198 = vmatpush.msra.mxu0 %v105
    %199 = vmatpush.msra.mxu0 %v102
    %200 = vmatpush.msra.mxu0 %v99
    %201 = vmatpush.msra.mxu0 %v96
    %202 = vmatpush.msra.mxu0 %v93
    %203 = vmatmul.f32.gmra.mxu0 %v90
    %v204 = vpop.f32.mrf.mxu0
    %v205 = vadd.f32 %v143, %v204
    %206 = vdwg.mxu0
    %v207 = vld [vmem:[%s8] sm:$0xff]
    %208 = vmatpush.xpose.msra.mxu0 0.0
    %209 = vmatpush.xpose.msra.mxu0 0.0
    %210 = vmatpush.xpose.msra.mxu0 0.0
    %211 = vmatpush.xpose.msra.mxu0 0.0
    %212 = vmatpush.xpose.msra.mxu0 0.0
    %213 = vmatpush.xpose.msra.mxu0 0.0
    %214 = vmatpush.xpose.msra.mxu0 0.0
    %215 = vmatpush.xpose.msra.mxu0 0.0
    %216 = vmatpush.xpose.msra.mxu0 0.0
    %217 = vmatpush.xpose.msra.mxu0 0.0
    %218 = vmatpush.xpose.msra.mxu0 0.0
    %219 = vmatpush.xpose.msra.mxu0 0.0
    %220 = vmatpush.xpose.msra.mxu0 0.0
    %221 = vmatpush.xpose.msra.mxu0 0.0
    %222 = vmatpush.xpose.msra.mxu0 0.0
    %223 = vmatpush.xpose.msra.mxu0 %v185
    %224 = vmatmul.f32.gmra.mxu0 %v165
    %v225 = vpop.f32.mrf.mxu0
    %v226 = vadd.f32 %v207, %v225
    %227 = vdwg.mxu0
    %vm228 = vcmask 64512
    %v229 = vsel %vm228, %v226, -inf
    %230 = vmax.xlane.f32.xlu0 %v229
    %v231 = vpop.xlane.xlu0 %230
    %v232 = vsub.f32 %v226, %v231
    %v233 = vmul.f32 %v232, 1.442695
    %v234 = vpow.pop %v233
    %v235 = vsel %vm228, %v234, 0.0
    %236 = vadd.xlane.f32.xlu0 %v235
    %v237 = vpop.xlane.xlu0 %236
    %v238 = vrcp.pop %v237
    %v239 = vmul.f32 %v234, %v238
    %v241 = vsel %vm228, %v239, 0
    %243 = vmatpush.msra.mxu0 0.0
    %244 = vmatpush.msra.mxu0 0.0
    %245 = vmatpush.msra.mxu0 0.0
    %246 = vmatpush.msra.mxu0 0.0
    %247 = vmatpush.msra.mxu0 0.0
    %248 = vmatpush.msra.mxu0 0.0
    %249 = vmatpush.msra.mxu0 0.0
    %250 = vmatpush.msra.mxu0 0.0
    %251 = vmatpush.msra.mxu0 0.0
    %252 = vmatpush.msra.mxu0 0.0
    %253 = vmatpush.msra.mxu0 0.0
    %254 = vmatpush.msra.mxu0 0.0
    %255 = vmatpush.msra.mxu0 0.0
    %256 = vmatpush.msra.mxu0 0.0
    %257 = vmatpush.msra.mxu0 0.0
    %258 = vmatpush.msra.mxu0 %v205
    %259 = vmatmul.f32.gmra.mxu0 %v241
    %v260 = vpop.f32.mrf.mxu0
    %v261 = vadd.f32 0.0, %v260
    %262 = vdwg.mxu0
    %v263 = vadd.f32 %v90, %v261
    %v264 = vld [vmem:[%s3] sm:$0xff]
    %v265 = vld [vmem:[%s3 + $0x8] sm:$0xff]
    %v266 = vld [vmem:[%s3 + $0x10] sm:$0xff]
    %v267 = vld [vmem:[%s3 + $0x18] sm:$0xff]
    %v268 = vld [vmem:[%s3 + $0x20] sm:$0xff]
    %v269 = vld [vmem:[%s3 + $0x28] sm:$0xff]
    %v270 = vld [vmem:[%s3 + $0x30] sm:$0xff]
    %v271 = vld [vmem:[%s3 + $0x38] sm:$0xff]
    %v272 = vld [vmem:[%s3 + $0x40] sm:$0xff]
    %v273 = vld [vmem:[%s3 + $0x48] sm:$0xff]
    %v274 = vld [vmem:[%s3 + $0x50] sm:$0xff]
    %v275 = vld [vmem:[%s3 + $0x58] sm:$0xff]
    %v276 = vld [vmem:[%s3 + $0x60] sm:$0xff]
    %v277 = vld [vmem:[%s3 + $0x68] sm:$0xff]
    %v278 = vld [vmem:[%s3 + $0x70] sm:$0xff]
    %v279 = vld [vmem:[%s3 + $0x78] sm:$0xff]
    %v280 = vld [vmem:[%s4] sm:$0x1]
    %v282 = vperm.slane %v280, 0
    %284 = vmatpush.msra.mxu0 %v279
    %285 = vmatpush.msra.mxu0 %v278
    %286 = vmatpush.msra.mxu0 %v277
    %287 = vmatpush.msra.mxu0 %v276
    %288 = vmatpush.msra.mxu0 %v275
    %289 = vmatpush.msra.mxu0 %v274
    %290 = vmatpush.msra.mxu0 %v273
    %291 = vmatpush.msra.mxu0 %v272
    %292 = vmatpush.msra.mxu0 %v271
    %293 = vmatpush.msra.mxu0 %v270
    %294 = vmatpush.msra.mxu0 %v269
    %295 = vmatpush.msra.mxu0 %v268
    %296 = vmatpush.msra.mxu0 %v267
    %297 = vmatpush.msra.mxu0 %v266
    %298 = vmatpush.msra.mxu0 %v265
    %299 = vmatpush.msra.mxu0 %v264
    %300 = vmatmul.f32.gmra.mxu0 %v263
    %v301 = vpop.f32.mrf.mxu0
    %v302 = vadd.f32 %v282, %v301
    %303 = vdwg.mxu0
    %v304 = vsub.f32 %v302, %v88
    %v305 = vld [vmem:[%s6] sm:$0xff]
    %307 = vset.pattern.permute.xlu0 0
    %308 = vperm.xlu0 %307, %v305
    %v309 = vpop.permute.xlu0 %308
    %v311 = vmul.f32 %v304, %v309
    %v312 = vmul.f32 %v311, %v75
    %v313 = vadd.f32 %v312, %v57
    %314 = vst.msk [vmem:[#allocation5] sm:$0xff] %vm228, %v313
    // Predicated region
    $region42: #{tpu_custom_call.1} parent=1 // pred_check
      _
    $region43: #{tpu_custom_call.1} parent=1 // pred_check_branch
      %316 = sbr.rel (0) target = $region45
    $region44: #{tpu_custom_call.1} parent=1 // pred_region
      %318 = vsyncadd [#allocation4], 0
      %s320 = sshll.u32 [#allocation5], 4
      %s321 = int_to_ptr.vmem [resolvable:$true] %s320
      %s322 = sshll.u32 %s9, 4
      %s323 = int_to_ptr.hbm [resolvable:$true] %s322
      %325 = dma.vmem_to_hbm [thread:$0]  %s321, 128, %s323, [#allocation4]
    $region45: #{tpu_custom_call.1} parent=1 // pred_fallthru
      _
    // Predicated region
    $region46: #{tpu_custom_call.1} parent=1 // pred_check
      _
    $region47: #{tpu_custom_call.1} parent=1 // pred_check_branch
      %327 = sbr.rel (0) target = $region49
    $region48: #{tpu_custom_call.1} parent=1 // pred_region
      %329 = dma.done [#allocation4], 128
    $region49: #{tpu_custom_call.1} parent=1 // pred_fallthru
      _
    %330 = vsyncpa [#allocation3], 1
    %331 = vsyncpa [#allocation4], 1

</llo_original>
